<compile_context>
chip_gen: v5e
topology: v5e:2x2
jax: 0.10.0
libtpu: 0.0.40
codegen_flags: <defaults>
</compile_context>

<pallas_src>
import functools

import jax
import jax.numpy as jnp
from jax.experimental import pallas as pl
from jax.experimental.pallas import tpu as pltpu

_LOG2E = 1.4426950408889634


# --------------------------------------------------------------------------------------
# Wrapper-side 2D RoPE (one XLA elementwise pass).  x: (B, H, S, Dh), positions: (B, S, 2)
# with (y, x) coordinates.  head_dim is split into a y-half and an x-half; each half gets
# standard 1D RoPE with its own coordinate.  Optional scale is folded into the result.
# --------------------------------------------------------------------------------------
def _apply_rope2d(x, positions, freq, F0, scale=1.0):
    B, H, S, Dh = x.shape
    D = Dh // 2
    quarter = D // 2
    inv_freq = 1.0 / (freq ** (jnp.arange(0, D, 2, dtype=jnp.float32) / D))        # (quarter,)
    ang_y = F0 * positions[..., 0].astype(jnp.float32)[..., None] * inv_freq       # (B, S, quarter)
    ang_x = F0 * positions[..., 1].astype(jnp.float32)[..., None] * inv_freq
    ang = jnp.concatenate([ang_y, ang_y, ang_x, ang_x], axis=-1)                   # (B, S, Dh)
    cos = jnp.cos(ang)[:, None, :, :]                                              # (B, 1, S, Dh)
    sin = jnp.sin(ang)[:, None, :, :]
    xf = x.astype(jnp.float32)
    y1, y2 = xf[..., :quarter], xf[..., quarter:D]
    x1, x2 = xf[..., D:D + quarter], xf[..., D + quarter:]
    rot = jnp.concatenate([-y2, y1, -x2, x1], axis=-1)
    return ((xf * cos + rot * sin) * scale).astype(x.dtype)


# --------------------------------------------------------------------------------------
# Fused kernel: flash attention (online exp2-softmax over kv tiles) + output projection.
# Grid = (batch, q_tiles, kv_tiles).  Refs:
#   q_ref (1,H,tq,Dh)  k_ref/v_ref (1,H,tk,Dh)  w_ref (E,E)  b_ref (1,E)  o_ref (1,tq,E)
# Scratch: acc (H,tq,Dh) f32; m,l (H,tq,1) f32.
# Q is pre-RoPE'd with scale*log2(e) folded in; K is pre-RoPE'd.
# --------------------------------------------------------------------------------------
def _flash_attn_proj_kernel(q_ref, k_ref, v_ref, w_ref, b_ref, o_ref,
                            acc_ref, m_ref, l_ref,
                            *, kv_len, need_kv_mask):
    ki = pl.program_id(2)
    nk = pl.num_programs(2)

    # ---- first kv tile for this (batch, q-tile): reset accumulators ----
    @pl.when(ki == 0)
    def _init():
        m_ref[...] = jnp.full(m_ref.shape, -jnp.inf, dtype=m_ref.dtype)
        l_ref[...] = jnp.zeros(l_ref.shape, dtype=l_ref.dtype)
        acc_ref[...] = jnp.zeros(acc_ref.shape, dtype=acc_ref.dtype)

    q = q_ref[0]                                  # (H, tq, Dh)
    k = k_ref[0]                                  # (H, tk, Dh)
    v = v_ref[0]                                  # (H, tk, Dh)
    tk = k.shape[1]

    # scores in the exp2 domain (scale*log2e already folded into Q): (H, tq, tk)
    s = jax.lax.dot_general(q, k, (((2,), (2,)), ((0,), (0,))),
                            preferred_element_type=jnp.float32)
    if need_kv_mask:
        col = ki * tk + jax.lax.broadcasted_iota(jnp.int32, (1, 1, tk), 2)
        s = jnp.where(col < kv_len, s, jnp.float32(-1e30))

    m_prev = m_ref[...]                           # (H, tq, 1)
    m_new = jnp.maximum(m_prev, jnp.max(s, axis=-1, keepdims=True))
    alpha = jnp.exp2(m_prev - m_new)
    p = jnp.exp2(s - m_new)                       # (H, tq, tk)
    l_ref[...] = alpha * l_ref[...] + jnp.sum(p, axis=-1, keepdims=True)
    pv = jax.lax.dot_general(p.astype(v.dtype), v, (((2,), (1,)), ((0,), (0,))),
                             preferred_element_type=jnp.float32)  # (H, tq, Dh)
    acc_ref[...] = alpha * acc_ref[...] + pv
    m_ref[...] = m_new

    # ---- last kv tile: normalize, single fused (tq,E)@(E,E) projection, lane-dense store ----
    @pl.when(ki == nk - 1)
    def _finalize():
        inv_l = pl.reciprocal(l_ref[...], approx=True)        # (H, tq, 1)
        o_heads = acc_ref[...] * inv_l                         # (H, tq, Dh) f32
        num_heads = o_heads.shape[0]
        # Concatenate heads along lanes -> (tq, E); one big contraction-E matmul on the MXU.
        o_cat = jnp.concatenate([o_heads[h] for h in range(num_heads)], axis=-1)
        out = jnp.dot(o_cat.astype(w_ref.dtype), w_ref[...],
                      preferred_element_type=jnp.float32)      # (tq, E)
        out = out + b_ref[...].astype(jnp.float32)
        o_ref[0] = out.astype(o_ref.dtype)


# --------------------------------------------------------------------------------------
# Wrapper implementing the module forward pass.
# --------------------------------------------------------------------------------------
def mha_with_rope_v2(query, key, value, q_pos, k_pos, proj_w, proj_b,
                     *, num_heads, rope_freq=100.0, rope_F0=1.0,
                     q_tile=128, kv_tile=256):
    B, Sq, E = query.shape
    Sk = key.shape[1]
    H = num_heads
    Dh = E // H
    assert Dh * H == E and Dh % 4 == 0

    def rup(x, m):
        return (x + m - 1) // m * m

    # (B, S, E) -> (B, H, S, Dh): one XLA transpose so the kernel never slices the head axis.
    qh = query.reshape(B, Sq, H, Dh).transpose(0, 2, 1, 3)
    kh = key.reshape(B, Sk, H, Dh).transpose(0, 2, 1, 3)
    vh = value.reshape(B, Sk, H, Dh).transpose(0, 2, 1, 3)

    # Pre-apply 2D RoPE once in the wrapper; fold softmax scale * log2(e) into Q (exp2 softmax).
    qh = _apply_rope2d(qh, q_pos, rope_freq, rope_F0, scale=(Dh ** -0.5) * _LOG2E)
    kh = _apply_rope2d(kh, k_pos, rope_freq, rope_F0)

    # Tile sizes: multiples of 8; pad sequences to tile multiples (padded kv columns masked).
    tq = rup(min(q_tile, rup(Sq, 8)), 8)
    tk = rup(min(kv_tile, rup(Sk, 8)), 8)
    itemsize = jnp.dtype(query.dtype).itemsize
    # Keep whole K/V VMEM-resident (single kv tile, constant block index -> loaded once for the
    # whole grid) when it fits a conservative budget; big bandwidth win for short/medium Sk.
    if kv_tile >= 128 and 2 * H * rup(Sk, 8) * Dh * itemsize <= (6 << 20):
        tk = rup(Sk, 8)
    Sq_pad = rup(Sq, tq)
    Sk_pad = rup(Sk, tk)

    if Sq_pad != Sq:
        qh = jnp.pad(qh, ((0, 0), (0, 0), (0, Sq_pad - Sq), (0, 0)))
    if Sk_pad != Sk:
        kh = jnp.pad(kh, ((0, 0), (0, 0), (0, Sk_pad - Sk), (0, 0)))
        vh = jnp.pad(vh, ((0, 0), (0, 0), (0, Sk_pad - Sk), (0, 0)))

    w_t = proj_w.T                     # (E_in, E_out): out = attended @ W^T + b
    b2 = proj_b.reshape(1, E)

    grid = (B, Sq_pad // tq, Sk_pad // tk)

    # VMEM budget: double-buffered tiles + resident weight + scratch + score-spill headroom.
    w_isz = jnp.dtype(proj_w.dtype).itemsize
    est = (2 * (H * tq * Dh + 2 * H * tk * Dh + tq * E) * itemsize
           + 2 * (E * E + E) * w_isz
           + (H * tq * Dh + 2 * H * tq) * 4
           + 2 * H * tq * tk * 4)
    vmem_limit = int(min(max(2 * est + (8 << 20), 24 << 20), 64 << 20))

    kernel = functools.partial(_flash_attn_proj_kernel,
                               kv_len=Sk, need_kv_mask=(Sk_pad != Sk))

    out = pl.pallas_call(
        kernel,
        out_shape=jax.ShapeDtypeStruct((B, Sq_pad, E), query.dtype),
        grid=grid,
        in_specs=[
            pl.BlockSpec((1, H, tq, Dh), lambda b, qi, ki: (b, 0, qi, 0)),   # Q (roped + scaled)
            pl.BlockSpec((1, H, tk, Dh), lambda b, qi, ki: (b, 0, ki, 0)),   # K (roped)
            pl.BlockSpec((1, H, tk, Dh), lambda b, qi, ki: (b, 0, ki, 0)),   # V
            # TODO(synk): pipeline_mode=pl.Buffered(1) on the two constant-index specs below would
            # halve their VMEM allocation (matters most on v7x's 64 MiB); omitted for portability.
            pl.BlockSpec((E, E), lambda b, qi, ki: (0, 0)),                  # W^T (VMEM-resident)
            pl.BlockSpec((1, E), lambda b, qi, ki: (0, 0)),                  # bias
        ],
        out_specs=pl.BlockSpec((1, tq, E), lambda b, qi, ki: (b, qi, 0)),
        scratch_shapes=[
            pltpu.VMEM((H, tq, Dh), jnp.float32),   # flash output accumulator
            pltpu.VMEM((H, tq, 1), jnp.float32),    # running max (exp2 domain)
            pltpu.VMEM((H, tq, 1), jnp.float32),    # running sum
        ],
        compiler_params=pltpu.CompilerParams(
            dimension_semantics=("parallel", "parallel", "arbitrary"),
            vmem_limit_bytes=vmem_limit,
        ),
    )(qh, kh, vh, w_t, b2)

    return out[:, :Sq] if Sq_pad != Sq else out


# --------------------------------------------------------------------------------------
# Pure-JAX reference (for validation).
# --------------------------------------------------------------------------------------
def mha_with_rope_v2_ref(query, key, value, q_pos, k_pos, proj_w, proj_b,
                         *, num_heads, rope_freq=100.0, rope_F0=1.0):
    B, Sq, E = query.shape
    Sk = key.shape[1]
    Dh = E // num_heads
    scale = Dh ** (-0.5)
    qh = query.reshape(B, Sq, num_heads, Dh).transpose(0, 2, 1, 3)
    kh = key.reshape(B, Sk, num_heads, Dh).transpose(0, 2, 1, 3)
    vh = value.reshape(B, Sk, num_heads, Dh).transpose(0, 2, 1, 3)

    def cos_sin(positions):
        D = Dh // 2
        inv_freq = 1.0 / (rope_freq ** (jnp.arange(0, D, 2, dtype=jnp.float32) / D))
        ang_y = rope_F0 * positions[..., 0].astype(jnp.float32)[..., None] * inv_freq
        ang_x = rope_F0 * positions[..., 1].astype(jnp.float32)[..., None] * inv_freq
        ang_y = jnp.concatenate([ang_y, ang_y], axis=-1)
        ang_x = jnp.concatenate([ang_x, ang_x], axis=-1)
        cos = jnp.concatenate([jnp.cos(ang_y), jnp.cos(ang_x)], axis=-1)
        sin = jnp.concatenate([jnp.sin(ang_y), jnp.sin(ang_x)], axis=-1)
        return cos, sin

    def rope(x, cos, sin):
        half = Dh // 2
        quarter = half // 2
        y1, y2 = x[..., :quarter], x[..., quarter:half]
        x1, x2 = x[..., half:half + quarter], x[..., half + quarter:]
        rot = jnp.concatenate([-y2, y1, -x2, x1], axis=-1)
        return x * cos[:, None] + rot * sin[:, None]

    cq, sq = cos_sin(q_pos)
    ck, sk = cos_sin(k_pos)
    qh = rope(qh, cq, sq)
    kh = rope(kh, ck, sk)
    s = jnp.einsum('bhqd,bhkd->bhqk', qh, kh) * scale
    w = jax.nn.softmax(s, axis=-1)
    o = jnp.einsum('bhqk,bhkd->bhqd', w, vh)
    o = o.transpose(0, 2, 1, 3).reshape(B, Sq, E)
    return o @ proj_w.T + proj_b


if __name__ == "__main__":
    # Small shapes consistent with the module: B=2, 16 patches (4x4 grid), embed_dim=32, 2 heads.
    B, S, E, H = 2, 16, 32, 2

    key0 = jax.random.PRNGKey(0)
    kq, kk, kv, kw, kb = jax.random.split(key0, 5)
    query = jax.random.normal(kq, (B, S, E), dtype=jnp.float32)
    keyt = jax.random.normal(kk, (B, S, E), dtype=jnp.float32)
    value = jax.random.normal(kv, (B, S, E), dtype=jnp.float32)

    # 2D patch positions on a 4x4 grid (y, x).
    ys, xs = jnp.meshgrid(jnp.arange(4), jnp.arange(4), indexing="ij")
    pos = jnp.stack([ys.reshape(-1), xs.reshape(-1)], axis=-1).astype(jnp.int32)  # (16, 2)
    q_pos = jnp.broadcast_to(pos, (B, S, 2))
    k_pos = jnp.broadcast_to(pos, (B, S, 2))

    # Deterministic nn.Linear(E, E) init (uniform +-1/sqrt(E)).
    bound = 1.0 / (E ** 0.5)
    proj_w = jax.random.uniform(kw, (E, E), minval=-bound, maxval=bound, dtype=jnp.float32)
    proj_b = jax.random.uniform(kb, (E,), minval=-bound, maxval=bound, dtype=jnp.float32)

    # Case 1: tile-divisible lengths; tiny tiles force a 2x2 (q, kv) tile grid per batch element
    # so the multi-step online-softmax accumulation path is exercised.
    out = mha_with_rope_v2(query, keyt, value, q_pos, k_pos, proj_w, proj_b,
                           num_heads=H, rope_freq=100.0, rope_F0=1.0,
                           q_tile=8, kv_tile=8)
    out = jax.block_until_ready(out)
    ref = mha_with_rope_v2_ref(query, keyt, value, q_pos, k_pos, proj_w, proj_b,
                               num_heads=H, rope_freq=100.0, rope_F0=1.0)
    assert out.shape == (B, S, E)
    assert jnp.allclose(out, ref, atol=2e-3, rtol=2e-3), "mismatch vs JAX reference (case 1)"

    # Case 2: non-tile-divisible lengths (exercises the pad + kv-column-mask path).
    Sq2, Sk2 = 11, 13
    out2 = mha_with_rope_v2(query[:, :Sq2], keyt[:, :Sk2], value[:, :Sk2],
                            q_pos[:, :Sq2], k_pos[:, :Sk2], proj_w, proj_b,
                            num_heads=H, rope_freq=100.0, rope_F0=1.0,
                            q_tile=8, kv_tile=8)
    out2 = jax.block_until_ready(out2)
    ref2 = mha_with_rope_v2_ref(query[:, :Sq2], keyt[:, :Sk2], value[:, :Sk2],
                                q_pos[:, :Sq2], k_pos[:, :Sk2], proj_w, proj_b,
                                num_heads=H, rope_freq=100.0, rope_F0=1.0)
    assert out2.shape == (B, Sq2, E)
    assert jnp.allclose(out2, ref2, atol=2e-3, rtol=2e-3), "mismatch vs JAX reference (case 2)"

    print("KERNEL_OK")
</pallas_src>

<mosaic_0001>
module attributes {stable_mosaic.version = 11 : i64} {
  func.func @_flash_attn_proj_kernel(%arg0: i32, %arg1: i32, %arg2: i32, %arg3: memref<1x2x8x16xf32, #tpu.memory_space<vmem>>, %arg4: memref<1x2x8x16xf32, #tpu.memory_space<vmem>>, %arg5: memref<1x2x8x16xf32, #tpu.memory_space<vmem>>, %arg6: memref<32x32xf32, #tpu.memory_space<vmem>>, %arg7: memref<1x32xf32, #tpu.memory_space<vmem>>, %arg8: memref<1x8x32xf32, #tpu.memory_space<vmem>>, %arg9: memref<2x8x16xf32, #tpu.memory_space<vmem>>, %arg10: memref<2x8x1xf32, #tpu.memory_space<vmem>>, %arg11: memref<2x8x1xf32, #tpu.memory_space<vmem>>) attributes {dimension_semantics = [#tpu.dimension_semantics<parallel>, #tpu.dimension_semantics<parallel>, #tpu.dimension_semantics<arbitrary>], iteration_bounds = array<i64: 2, 2, 2>, scalar_prefetch = 0 : i64, scratch_operands = 3 : i64, tpu.core_type = #tpu.core_type<tc>, window_params = [{transform_indices = @transform_0, window_bounds = array<i64: 1, 2, 8, 16>}, {transform_indices = @transform_1, window_bounds = array<i64: 1, 2, 8, 16>}, {transform_indices = @transform_2, window_bounds = array<i64: 1, 2, 8, 16>}, {pipeline_mode = #tpu.pipeline_mode<synchronous>, transform_indices = @transform_3, window_bounds = array<i64: 32, 32>}, {pipeline_mode = #tpu.pipeline_mode<synchronous>, transform_indices = @transform_4, window_bounds = array<i64: 1, 32>}, {transform_indices = @transform_5, window_bounds = array<i64: 1, 8, 32>}]} {
    %c0_i32 = arith.constant 0 : i32
    %0 = arith.cmpi eq, %arg2, %c0_i32 : i32
    %1 = arith.extui %0 : i1 to i32
    %c0_i32_0 = arith.constant 0 : i32
    %2 = arith.cmpi ne, %1, %c0_i32_0 : i32
    scf.if %2 {
      %cst_34 = arith.constant 0xFF800000 : f32
      %35 = vector.broadcast %cst_34 : f32 to vector<2x8x1xf32>
      %c0_35 = arith.constant 0 : index
      %c0_36 = arith.constant 0 : index
      %c0_37 = arith.constant 0 : index
      %36 = vector.load %arg10[%c0_35, %c0_36, %c0_37] : memref<2x8x1xf32, #tpu.memory_space<vmem>>, vector<2x8x1xf32>
      tpu.vector_store %arg10[%c0_35, %c0_36, %c0_37], %35 {strides = array<i32>} : memref<2x8x1xf32, #tpu.memory_space<vmem>>, vector<2x8x1xf32>,
      %cst_38 = arith.constant 0.000000e+00 : f32
      %37 = vector.broadcast %cst_38 : f32 to vector<2x8x1xf32>
      %c0_39 = arith.constant 0 : index
      %c0_40 = arith.constant 0 : index
      %c0_41 = arith.constant 0 : index
      %38 = vector.load %arg11[%c0_39, %c0_40, %c0_41] : memref<2x8x1xf32, #tpu.memory_space<vmem>>, vector<2x8x1xf32>
      tpu.vector_store %arg11[%c0_39, %c0_40, %c0_41], %37 {strides = array<i32>} : memref<2x8x1xf32, #tpu.memory_space<vmem>>, vector<2x8x1xf32>,
      %cst_42 = arith.constant 0.000000e+00 : f32
      %39 = vector.broadcast %cst_42 : f32 to vector<2x8x16xf32>
      %c0_43 = arith.constant 0 : index
      %c0_44 = arith.constant 0 : index
      %c0_45 = arith.constant 0 : index
      %40 = vector.load %arg9[%c0_43, %c0_44, %c0_45] : memref<2x8x16xf32, #tpu.memory_space<vmem>>, vector<2x8x16xf32>
      tpu.vector_store %arg9[%c0_43, %c0_44, %c0_45], %39 {strides = array<i32>} : memref<2x8x16xf32, #tpu.memory_space<vmem>>, vector<2x8x16xf32>,
    } else {
    }
    %c0 = arith.constant 0 : index
    %c0_1 = arith.constant 0 : index
    %c0_2 = arith.constant 0 : index
    %c0_3 = arith.constant 0 : index
    %3 = vector.load %arg3[%c0, %c0_1, %c0_2, %c0_3] : memref<1x2x8x16xf32, #tpu.memory_space<vmem>>, vector<1x2x8x16xf32>
    %4 = vector.shape_cast %3 : vector<1x2x8x16xf32> to vector<2x8x16xf32>
    %c0_4 = arith.constant 0 : index
    %c0_5 = arith.constant 0 : index
    %c0_6 = arith.constant 0 : index
    %c0_7 = arith.constant 0 : index
    %5 = vector.load %arg4[%c0_4, %c0_5, %c0_6, %c0_7] : memref<1x2x8x16xf32, #tpu.memory_space<vmem>>, vector<1x2x8x16xf32>
    %6 = vector.shape_cast %5 : vector<1x2x8x16xf32> to vector<2x8x16xf32>
    %c0_8 = arith.constant 0 : index
    %c0_9 = arith.constant 0 : index
    %c0_10 = arith.constant 0 : index
    %c0_11 = arith.constant 0 : index
    %7 = vector.load %arg5[%c0_8, %c0_9, %c0_10, %c0_11] : memref<1x2x8x16xf32, #tpu.memory_space<vmem>>, vector<1x2x8x16xf32>
    %8 = vector.shape_cast %7 : vector<1x2x8x16xf32> to vector<2x8x16xf32>
    %cst = arith.constant dense<0.000000e+00> : vector<2x8x8xf32>
    %9 = tpu.matmul %4, %6, %cst {dimension_numbers = #tpu.dot_dimension_numbers<[2], [2], [1], [1], [0, 0, 0, 1, 1, 1], [0], [0]>} : vector<2x8x16xf32>, vector<2x8x16xf32>, vector<2x8x8xf32> -> vector<2x8x8xf32>
    %c0_12 = arith.constant 0 : index
    %c0_13 = arith.constant 0 : index
    %c0_14 = arith.constant 0 : index
    %10 = vector.load %arg10[%c0_12, %c0_13, %c0_14] : memref<2x8x1xf32, #tpu.memory_space<vmem>>, vector<2x8x1xf32>
    %cst_15 = arith.constant dense<0xFF800000> : vector<2x8xf32>
    %11 = vector.multi_reduction <maximumf>, %9, %cst_15 [2] : vector<2x8x8xf32> to vector<2x8xf32>
    %12 = vector.shape_cast %11 : vector<2x8xf32> to vector<2x8x1xf32>
    %13 = arith.maximumf %10, %12 : vector<2x8x1xf32>
    %14 = arith.subf %10, %13 : vector<2x8x1xf32>
    %15 = math.exp2 %14 : vector<2x8x1xf32>
    %16 = vector.broadcast %13 : vector<2x8x1xf32> to vector<2x8x8xf32>
    %17 = arith.subf %9, %16 : vector<2x8x8xf32>
    %18 = math.exp2 %17 : vector<2x8x8xf32>
    %c0_16 = arith.constant 0 : index
    %c0_17 = arith.constant 0 : index
    %c0_18 = arith.constant 0 : index
    %19 = vector.load %arg11[%c0_16, %c0_17, %c0_18] : memref<2x8x1xf32, #tpu.memory_space<vmem>>, vector<2x8x1xf32>
    %20 = arith.mulf %15, %19 : vector<2x8x1xf32>
    %cst_19 = arith.constant dense<0.000000e+00> : vector<2x8xf32>
    %21 = vector.multi_reduction <add>, %18, %cst_19 [2] : vector<2x8x8xf32> to vector<2x8xf32>
    %22 = vector.shape_cast %21 : vector<2x8xf32> to vector<2x8x1xf32>
    %23 = arith.addf %20, %22 : vector<2x8x1xf32>
    %c0_20 = arith.constant 0 : index
    %c0_21 = arith.constant 0 : index
    %c0_22 = arith.constant 0 : index
    %24 = vector.load %arg11[%c0_20, %c0_21, %c0_22] : memref<2x8x1xf32, #tpu.memory_space<vmem>>, vector<2x8x1xf32>
    tpu.vector_store %arg11[%c0_20, %c0_21, %c0_22], %23 {strides = array<i32>} : memref<2x8x1xf32, #tpu.memory_space<vmem>>, vector<2x8x1xf32>,
    %cst_23 = arith.constant dense<0.000000e+00> : vector<2x8x16xf32>
    %25 = tpu.matmul %18, %8, %cst_23 {dimension_numbers = #tpu.dot_dimension_numbers<[2], [1], [1], [2], [0, 0, 0, 1, 1, 2], [0], [0]>} : vector<2x8x8xf32>, vector<2x8x16xf32>, vector<2x8x16xf32> -> vector<2x8x16xf32>
    %c0_24 = arith.constant 0 : index
    %c0_25 = arith.constant 0 : index
    %c0_26 = arith.constant 0 : index
    %26 = vector.load %arg9[%c0_24, %c0_25, %c0_26] : memref<2x8x16xf32, #tpu.memory_space<vmem>>, vector<2x8x16xf32>
    %27 = vector.broadcast %15 : vector<2x8x1xf32> to vector<2x8x16xf32>
    %28 = arith.mulf %27, %26 : vector<2x8x16xf32>
    %29 = arith.addf %28, %25 : vector<2x8x16xf32>
    %c0_27 = arith.constant 0 : index
    %c0_28 = arith.constant 0 : index
    %c0_29 = arith.constant 0 : index
    %30 = vector.load %arg9[%c0_27, %c0_28, %c0_29] : memref<2x8x16xf32, #tpu.memory_space<vmem>>, vector<2x8x16xf32>
    tpu.vector_store %arg9[%c0_27, %c0_28, %c0_29], %29 {strides = array<i32>} : memref<2x8x16xf32, #tpu.memory_space<vmem>>, vector<2x8x16xf32>,
    %c0_30 = arith.constant 0 : index
    %c0_31 = arith.constant 0 : index
    %c0_32 = arith.constant 0 : index
    %31 = vector.load %arg10[%c0_30, %c0_31, %c0_32] : memref<2x8x1xf32, #tpu.memory_space<vmem>>, vector<2x8x1xf32>
    tpu.vector_store %arg10[%c0_30, %c0_31, %c0_32], %13 {strides = array<i32>} : memref<2x8x1xf32, #tpu.memory_space<vmem>>, vector<2x8x1xf32>,
    %c1_i32 = arith.constant 1 : i32
    %32 = arith.cmpi eq, %arg2, %c1_i32 : i32
    %33 = arith.extui %32 : i1 to i32
    %c0_i32_33 = arith.constant 0 : i32
    %34 = arith.cmpi ne, %33, %c0_i32_33 : i32
    scf.if %34 {
      %c0_34 = arith.constant 0 : index
      %c0_35 = arith.constant 0 : index
      %c0_36 = arith.constant 0 : index
      %35 = vector.load %arg11[%c0_34, %c0_35, %c0_36] : memref<2x8x1xf32, #tpu.memory_space<vmem>>, vector<2x8x1xf32>
      %36 = tpu.reciprocal %35 {approx = true} : vector<2x8x1xf32> -> vector<2x8x1xf32>
      %c0_37 = arith.constant 0 : index
      %c0_38 = arith.constant 0 : index
      %c0_39 = arith.constant 0 : index
      %37 = vector.load %arg9[%c0_37, %c0_38, %c0_39] : memref<2x8x16xf32, #tpu.memory_space<vmem>>, vector<2x8x16xf32>
      %38 = vector.broadcast %36 : vector<2x8x1xf32> to vector<2x8x16xf32>
      %39 = arith.mulf %37, %38 : vector<2x8x16xf32>
      %40 = vector.extract_strided_slice %39 {offsets = [0, 0, 0], sizes = [1, 8, 16], strides = [1, 1, 1]} : vector<2x8x16xf32> to vector<1x8x16xf32>
      %41 = vector.shape_cast %40 : vector<1x8x16xf32> to vector<8x16xf32>
      %42 = vector.extract_strided_slice %39 {offsets = [1, 0, 0], sizes = [1, 8, 16], strides = [1, 1, 1]} : vector<2x8x16xf32> to vector<1x8x16xf32>
      %43 = vector.shape_cast %42 : vector<1x8x16xf32> to vector<8x16xf32>
      %44 = tpu.concatenate %41, %43 in 1 : vector<8x16xf32>, vector<8x16xf32> -> vector<8x32xf32>
      %c0_40 = arith.constant 0 : index
      %c0_41 = arith.constant 0 : index
      %45 = vector.load %arg6[%c0_40, %c0_41] : memref<32x32xf32, #tpu.memory_space<vmem>>, vector<32x32xf32>
      %cst_42 = arith.constant dense<0.000000e+00> : vector<8x32xf32>
      %46 = tpu.matmul %44, %45, %cst_42 {dimension_numbers = #tpu.dot_dimension_numbers<[1], [0], [0], [1], [0, 0, 1, 1], [], []>} : vector<8x32xf32>, vector<32x32xf32>, vector<8x32xf32> -> vector<8x32xf32>
      %c0_43 = arith.constant 0 : index
      %c0_44 = arith.constant 0 : index
      %47 = vector.load %arg7[%c0_43, %c0_44] : memref<1x32xf32, #tpu.memory_space<vmem>>, vector<1x32xf32>
      %48 = vector.broadcast %47 : vector<1x32xf32> to vector<8x32xf32>
      %49 = arith.addf %46, %48 : vector<8x32xf32>
      %c0_45 = arith.constant 0 : index
      %c0_46 = arith.constant 0 : index
      %c0_47 = arith.constant 0 : index
      %50 = vector.load %arg8[%c0_45, %c0_46, %c0_47] : memref<1x8x32xf32, #tpu.memory_space<vmem>>, vector<1x8x32xf32>
      %51 = vector.shape_cast %50 : vector<1x8x32xf32> to vector<8x32xf32>
      %52 = vector.shape_cast %49 : vector<8x32xf32> to vector<1x8x32xf32>
      tpu.vector_store %arg8[%c0_45, %c0_46, %c0_47], %52 {strides = array<i32>} : memref<1x8x32xf32, #tpu.memory_space<vmem>>, vector<1x8x32xf32>,
    } else {
    }
    return
  }
  func.func @transform_0(%arg0: i32, %arg1: i32, %arg2: i32) -> (i32, i32, i32, i32) {
    %c0_i32 = arith.constant 0 : i32
    %c0_i32_0 = arith.constant 0 : i32
    %c0_i32_1 = arith.constant 0 : i32
    return %arg0, %c0_i32, %arg1, %c0_i32_0 : i32, i32, i32, i32
  }
  func.func @transform_1(%arg0: i32, %arg1: i32, %arg2: i32) -> (i32, i32, i32, i32) {
    %c0_i32 = arith.constant 0 : i32
    %c0_i32_0 = arith.constant 0 : i32
    %c0_i32_1 = arith.constant 0 : i32
    return %arg0, %c0_i32, %arg2, %c0_i32_0 : i32, i32, i32, i32
  }
  func.func @transform_2(%arg0: i32, %arg1: i32, %arg2: i32) -> (i32, i32, i32, i32) {
    %c0_i32 = arith.constant 0 : i32
    %c0_i32_0 = arith.constant 0 : i32
    %c0_i32_1 = arith.constant 0 : i32
    return %arg0, %c0_i32, %arg2, %c0_i32_0 : i32, i32, i32, i32
  }
  func.func @transform_3(%arg0: i32, %arg1: i32, %arg2: i32) -> (i32, i32) {
    %c0_i32 = arith.constant 0 : i32
    %c0_i32_0 = arith.constant 0 : i32
    %c0_i32_1 = arith.constant 0 : i32
    return %c0_i32, %c0_i32_0 : i32, i32
  }
  func.func @transform_4(%arg0: i32, %arg1: i32, %arg2: i32) -> (i32, i32) {
    %c0_i32 = arith.constant 0 : i32
    %c0_i32_0 = arith.constant 0 : i32
    %c0_i32_1 = arith.constant 0 : i32
    return %c0_i32, %c0_i32_0 : i32, i32
  }
  func.func @transform_5(%arg0: i32, %arg1: i32, %arg2: i32) -> (i32, i32, i32) {
    %c0_i32 = arith.constant 0 : i32
    %c0_i32_0 = arith.constant 0 : i32
    return %arg0, %arg1, %c0_i32 : i32, i32, i32
  }
}

</mosaic_0001>

<llo_original>
// kernel: tpu_custom_call.1
$region0: #{tpu_custom_call.1}
  #allocation0 [shape = 'u32[]', space=smem, size = 0x4, offset = 0x4, fixed_abs, tag = 'smem constant byte address 0x4 - core index']
  #allocation1 [shape = 'u32[72,128]{1,0:T(1,128)}', space=vmem, size = 0x9000, scoped, tag = 'internal scratch']
  #allocation2 [shape = 'f32[2,8,16]{2,1,0:T(8,128)}', space=vmem, size = 0x2000, scoped, tag = 'scratch operand']
  #allocation3 [shape = 'f32[2,8,1]{2,1,0:T(8,128)}', space=vmem, size = 0x2000, scoped, tag = 'scratch operand']
  #allocation4 [shape = 'f32[2,8,1]{2,1,0:T(8,128)}', space=vmem, size = 0x2000, scoped, tag = 'scratch operand']
  %s0 = inlined_call_operand.hbm [shape: f32[2,2,16,16], index: 0, kind: input, shape index: {}]
  %s1 = inlined_call_operand.hbm [shape: f32[2,2,16,16], index: 1, kind: input, shape index: {}]
  %s2 = inlined_call_operand.hbm [shape: f32[2,2,16,16], index: 2, kind: input, shape index: {}]
  %s3 = inlined_call_operand.hbm [shape: f32[32,32], index: 3, kind: input, shape index: {}]
  %s4 = inlined_call_operand.vmem [shape: f32[1,32], index: 4, kind: input, shape index: {}]
  %s5 = inlined_call_operand.hbm [shape: f32[2,16,32], index: 5, kind: output, shape index: {}]
  %s6 = sld [smem:[#allocation0]]
  $region77: #{tpu_custom_call.1} parent=0
    _
  %s8 = ssub.s32 1, %s6
  %s9 = scalar_select 0, %s8, %s6
  $region1: #{tpu_custom_call.1} parent=0
    #allocation5 [shape = 'u8[16384]{0}', space=vmem, size = 0x4000, scoped, tag = 'input window, operand 0']
    #allocation6 [shape = 's32[2]{0}', space=sflag, size = 0x8, scoped, tag = 'scoped memory for tpu_custom_call.1']
    #allocation7 [shape = 's32[2]{0}', space=sflag, size = 0x8, scoped, tag = 'scoped memory for tpu_custom_call.1']
    #allocation8 [shape = 'u8[16384]{0}', space=vmem, size = 0x4000, scoped, tag = 'input window, operand 1']
    #allocation9 [shape = 's32[2]{0}', space=sflag, size = 0x8, scoped, tag = 'scoped memory for tpu_custom_call.1']
    #allocation10 [shape = 'u8[16384]{0}', space=vmem, size = 0x4000, scoped, tag = 'input window, operand 2']
    #allocation11 [shape = 'u8[16384]{0}', space=vmem, size = 0x4000, scoped, tag = 'input window, operand 3, single buffered']
    #allocation12 [shape = 's32[1]{0}', space=sflag, size = 0x4, scoped, tag = 'scoped memory for tpu_custom_call.1']
    #allocation13 [shape = 'u8[8192]{0}', space=vmem, size = 0x2000, scoped, tag = 'output window, operand 0']
    %10 = vsyncpa [#allocation6], 0
    %s11 = scalar_lea.sflag [#allocation6], 1
    %12 = vsyncpa %s11, 0
    %13 = vsyncpa [#allocation9], 0
    %s14 = scalar_lea.sflag [#allocation9], 1
    %15 = vsyncpa %s14, 0
    %16 = vsyncpa [#allocation12], 0
    %17 = vsyncpa [#allocation7], 0
    %s18 = scalar_lea.sflag [#allocation7], 1
    %19 = vsyncpa %s18, 0
    loop: start=0, step=1, limit=10
    $region2: #{tpu_custom_call.1} parent=1 // loop_pre_header
      _
    $region3: #{tpu_custom_call.1} parent=1 // loop_header
      %s21 = sphi 0, %s25
      %p22 = scmp.ge.s32.totalorder %s21, 10
      %s28 = sphi 0, %s47
      %s29 = sphi 0, %s43
      %s30 = sphi 0, %s39
      %s31 = sphi 0, %s28
      %s32 = sphi 0, %s29
      %s33 = sphi 0, %s30
      %s34 = sphi 0, %s31
      %s35 = sphi 0, %s32
      %s36 = sphi 0, %s33
      %s52 = sphi 0, %s54
      %s55 = sphi 0, %s52
      %s56 = sphi 0, %s55
      %s72 = sphi 0, %s56
      %s80 = sphi 0, %s82
      %s83 = sphi 0, %s80
      %s84 = sphi 0, %s83
      %s100 = sphi 0, %s84
      %s108 = sphi 0, %s110
      %s111 = sphi 0, %s108
      %s112 = sphi 0, %s111
      %s128 = sphi 0, %s112
      %s132 = sphi 0, %s132
      %s134 = sphi 0, %s132
      %s135 = sphi 0, %s134
      %s149 = sphi 0, %s135
      %s153 = sphi 0, %s153
      %s155 = sphi 0, %s153
      %s156 = sphi 0, %s155
      %s170 = sphi 0, %s156
      %s178 = sphi 0, %s180
      %s181 = sphi 0, %s178
      %s182 = sphi 0, %s181
      %s198 = sphi 0, %s182
    $region4: #{tpu_custom_call.1} parent=1 // loop_header_branch
      %24 = sbr.rel (%p22) target = $region8
    $region5: #{tpu_custom_call.1} parent=1 // loop_body
      %s26 = ssub.s32 %s21, 1
      %s27 = ssub.s32 %s21, 2
      %s37 = sadd.s32 1, %s30
      %p38 = scmp.ge.s32.totalorder %s37, 2
      %s39 = scalar_select %p38, 0, %s37
      %s40 = sadd.s32 1, %s29
      %s41 = scalar_select %p38, %s40, %s29
      %p42 = scmp.ge.s32.totalorder %s41, 2
      %s43 = scalar_select %p42, 0, %s41
      %s44 = sadd.s32 1, %s28
      %s45 = scalar_select %p42, %s44, %s28
      %p46 = scmp.ge.s32.totalorder %s45, 2
      %s47 = scalar_select %p46, 0, %s45
      %s48 = ssub.s32 %s28, %s47
      %s49 = ssub.s32 %s29, %s43
      %s50 = sor.u32 %s48, %s49
      %p51 = scmp.eq.s32.totalorder %s50, 0
      %s53 = sadd.s32 %s52, 1
      %s54 = scalar_select %p51, %s52, %s53
      %p57 = pneg %p51
      %p58 = scmp.eq.s32.totalorder %s21, 7
      %p59 = por %p57, %p58
      %p60 = scmp.ne.s32.totalorder %s52, %s55
      %p61 = scmp.eq.s32.totalorder %s21, 0
      %p62 = por %p60, %p61
      %p63 = scmp.ne.s32.totalorder %s52, %s55
      %p64 = scmp.eq.s32.totalorder %s26, 7
      %p65 = por %p63, %p64
      %p66 = scmp.ne.s32.totalorder %s55, %s56
      %p67 = scmp.eq.s32.totalorder %s26, 0
      %p68 = por %p66, %p67
      %p69 = scmp.ne.s32.totalorder %s55, %s56
      %p70 = scmp.eq.s32.totalorder %s27, 7
      %p71 = por %p69, %p70
      %p73 = scmp.ne.s32.totalorder %s56, %s72
      %p74 = scmp.eq.s32.totalorder %s27, 0
      %p75 = por %p73, %p74
      %s76 = ssub.s32 %s28, %s47
      %s77 = ssub.s32 %s30, %s39
      %s78 = sor.u32 %s76, %s77
      %p79 = scmp.eq.s32.totalorder %s78, 0
      %s81 = sadd.s32 %s80, 1
      %s82 = scalar_select %p79, %s80, %s81
      %p85 = pneg %p79
      %p86 = scmp.eq.s32.totalorder %s21, 7
      %p87 = por %p85, %p86
      %p88 = scmp.ne.s32.totalorder %s80, %s83
      %p89 = scmp.eq.s32.totalorder %s21, 0
      %p90 = por %p88, %p89
      %p91 = scmp.ne.s32.totalorder %s80, %s83
      %p92 = scmp.eq.s32.totalorder %s26, 7
      %p93 = por %p91, %p92
      %p94 = scmp.ne.s32.totalorder %s83, %s84
      %p95 = scmp.eq.s32.totalorder %s26, 0
      %p96 = por %p94, %p95
      %p97 = scmp.ne.s32.totalorder %s83, %s84
      %p98 = scmp.eq.s32.totalorder %s27, 7
      %p99 = por %p97, %p98
      %p101 = scmp.ne.s32.totalorder %s84, %s100
      %p102 = scmp.eq.s32.totalorder %s27, 0
      %p103 = por %p101, %p102
      %s104 = ssub.s32 %s28, %s47
      %s105 = ssub.s32 %s30, %s39
      %s106 = sor.u32 %s104, %s105
      %p107 = scmp.eq.s32.totalorder %s106, 0
      %s109 = sadd.s32 %s108, 1
      %s110 = scalar_select %p107, %s108, %s109
      %p113 = pneg %p107
      %p114 = scmp.eq.s32.totalorder %s21, 7
      %p115 = por %p113, %p114
      %p116 = scmp.ne.s32.totalorder %s108, %s111
      %p117 = scmp.eq.s32.totalorder %s21, 0
      %p118 = por %p116, %p117
      %p119 = scmp.ne.s32.totalorder %s108, %s111
      %p120 = scmp.eq.s32.totalorder %s26, 7
      %p121 = por %p119, %p120
      %p122 = scmp.ne.s32.totalorder %s111, %s112
      %p123 = scmp.eq.s32.totalorder %s26, 0
      %p124 = por %p122, %p123
      %p125 = scmp.ne.s32.totalorder %s111, %s112
      %p126 = scmp.eq.s32.totalorder %s27, 7
      %p127 = por %p125, %p126
      %p129 = scmp.ne.s32.totalorder %s112, %s128
      %p130 = scmp.eq.s32.totalorder %s27, 0
      %p131 = por %p129, %p130
      %s133 = sadd.s32 %s132, 1
      %p136 = scmp.eq.s32.totalorder %s21, 7
      %p137 = scmp.ne.s32.totalorder %s132, %s134
      %p138 = scmp.eq.s32.totalorder %s21, 0
      %p139 = por %p137, %p138
      %p140 = scmp.ne.s32.totalorder %s132, %s134
      %p141 = scmp.eq.s32.totalorder %s26, 7
      %p142 = por %p140, %p141
      %p143 = scmp.ne.s32.totalorder %s134, %s135
      %p144 = scmp.eq.s32.totalorder %s26, 0
      %p145 = por %p143, %p144
      %p146 = scmp.ne.s32.totalorder %s134, %s135
      %p147 = scmp.eq.s32.totalorder %s27, 7
      %p148 = por %p146, %p147
      %p150 = scmp.ne.s32.totalorder %s135, %s149
      %p151 = scmp.eq.s32.totalorder %s27, 0
      %p152 = por %p150, %p151
      %s154 = sadd.s32 %s153, 1
      %p157 = scmp.eq.s32.totalorder %s21, 7
      %p158 = scmp.ne.s32.totalorder %s153, %s155
      %p159 = scmp.eq.s32.totalorder %s21, 0
      %p160 = por %p158, %p159
      %p161 = scmp.ne.s32.totalorder %s153, %s155
      %p162 = scmp.eq.s32.totalorder %s26, 7
      %p163 = por %p161, %p162
      %p164 = scmp.ne.s32.totalorder %s155, %s156
      %p165 = scmp.eq.s32.totalorder %s26, 0
      %p166 = por %p164, %p165
      %p167 = scmp.ne.s32.totalorder %s155, %s156
      %p168 = scmp.eq.s32.totalorder %s27, 7
      %p169 = por %p167, %p168
      %p171 = scmp.ne.s32.totalorder %s156, %s170
      %p172 = scmp.eq.s32.totalorder %s27, 0
      %p173 = por %p171, %p172
      %s174 = ssub.s32 %s28, %s47
      %s175 = ssub.s32 %s29, %s43
      %s176 = sor.u32 %s174, %s175
      %p177 = scmp.eq.s32.totalorder %s176, 0
      %s179 = sadd.s32 %s178, 1
      %s180 = scalar_select %p177, %s178, %s179
      %p183 = pneg %p177
      %p184 = scmp.eq.s32.totalorder %s21, 7
      %p185 = por %p183, %p184
      %p186 = scmp.ne.s32.totalorder %s178, %s181
      %p187 = scmp.eq.s32.totalorder %s21, 0
      %p188 = por %p186, %p187
      %p189 = scmp.ne.s32.totalorder %s178, %s181
      %p190 = scmp.eq.s32.totalorder %s26, 7
      %p191 = por %p189, %p190
      %p192 = scmp.ne.s32.totalorder %s181, %s182
      %p193 = scmp.eq.s32.totalorder %s26, 0
      %p194 = por %p192, %p193
      %p195 = scmp.ne.s32.totalorder %s181, %s182
      %p196 = scmp.eq.s32.totalorder %s27, 7
      %p197 = por %p195, %p196
      %p199 = scmp.ne.s32.totalorder %s182, %s198
      %p200 = scmp.eq.s32.totalorder %s27, 0
      %p201 = por %p199, %p200
      %p202 = scmp.le.s32.totalorder 1, %s21
      %p203 = scmp.lt.s32.totalorder %s21, 9
      %p204 = pnand %p202, %p203
      %p205 = pneg %p204
      // Predicated region
      $region9: #{tpu_custom_call.1} parent=5 // pred_check
        _
      $region10: #{tpu_custom_call.1} parent=5 // pred_check_branch
        %207 = sbr.rel (%p204) target = $region12
      $region11: #{tpu_custom_call.1} parent=5 // pred_region
        %s208 = ssub.s32 %s21, 1
        // Predicated region
        $region13: #{tpu_custom_call.1} parent=11 // pred_check
          %p209 = pneg %p145
        $region14: #{tpu_custom_call.1} parent=11 // pred_check_branch
          %211 = sbr.rel (%p209) target = $region16
        $region15: #{tpu_custom_call.1} parent=11 // pred_region
          %213 = vsyncadd [#allocation12], 0
          %s214 = sshll.u32 %s3, 4
          %s215 = int_to_ptr.hbm [resolvable:$true] %s214
          %s216 = sshll.u32 [#allocation11], 4
          %s217 = int_to_ptr.vmem [resolvable:$true] %s216
          %222 = dma.hbm_to_vmem [thread:$0]  %s215, 512, %s217, [#allocation12], 128, 128, 8
        $region16: #{tpu_custom_call.1} parent=11 // pred_fallthru
          _
        // Predicated region
        $region17: #{tpu_custom_call.1} parent=11 // pred_check
          %p223 = pneg %p166
        $region18: #{tpu_custom_call.1} parent=11 // pred_check_branch
          %225 = sbr.rel (%p223) target = $region20
        $region19: #{tpu_custom_call.1} parent=11 // pred_region
          _
        $region20: #{tpu_custom_call.1} parent=11 // pred_fallthru
          _
      $region12: #{tpu_custom_call.1} parent=5 // pred_fallthru
        _
      %p226 = scmp.lt.s32.totalorder %s21, 8
      // Predicated region
      $region21: #{tpu_custom_call.1} parent=5 // pred_check
        %p227 = pneg %p226
      $region22: #{tpu_custom_call.1} parent=5 // pred_check_branch
        %229 = sbr.rel (%p227) target = $region24
      $region23: #{tpu_custom_call.1} parent=5 // pred_region
        // Predicated region
        $region25: #{tpu_custom_call.1} parent=23 // pred_check
          %p230 = pneg %p62
        $region26: #{tpu_custom_call.1} parent=23 // pred_check_branch
          %232 = sbr.rel (%p230) target = $region28
        $region27: #{tpu_custom_call.1} parent=23 // pred_region
          %s233 = sand.u32 %s52, 1
          %s234 = scalar_lea.sflag [#allocation6], %s233
          %s235 = sand.u32 %s52, 1
          %s236 = smul.addr %s235, 16
          %s237 = scalar_lea.vmem [#allocation5], %s236
          %239 = vsyncadd %s234, 0
          %s240 = smul.addr %s28, 4
          %s241 = sadd.s32 %s29, %s240
          %s242 = smul.addr %s241, 8
          %s243 = scalar_lea.hbm %s0, %s242
          %s244 = sshll.u32 %s243, 4
          %s245 = int_to_ptr.hbm [resolvable:$true] %s244
          %s246 = sshll.u32 %s237, 4
          %s247 = int_to_ptr.vmem [resolvable:$true] %s246
          %252 = dma.hbm_to_vmem [thread:$0]  %s245, 256, %s247, %s234, 256, 128, 8
        $region28: #{tpu_custom_call.1} parent=23 // pred_fallthru
          _
        // Predicated region
        $region29: #{tpu_custom_call.1} parent=23 // pred_check
          %p253 = pneg %p90
        $region30: #{tpu_custom_call.1} parent=23 // pred_check_branch
          %255 = sbr.rel (%p253) target = $region32
        $region31: #{tpu_custom_call.1} parent=23 // pred_region
          %s256 = sand.u32 %s21, 1
          %s257 = scalar_lea.sflag [#allocation9], %s256
          %s258 = sand.u32 %s80, 1
          %s259 = smul.addr %s258, 16
          %s260 = scalar_lea.vmem [#allocation8], %s259
          %262 = vsyncadd %s257, 0
          %s263 = smul.addr %s28, 4
          %s264 = sadd.s32 %s30, %s263
          %s265 = smul.addr %s264, 8
          %s266 = scalar_lea.hbm %s1, %s265
          %s267 = sshll.u32 %s266, 4
          %s268 = int_to_ptr.hbm [resolvable:$true] %s267
          %s269 = sshll.u32 %s260, 4
          %s270 = int_to_ptr.vmem [resolvable:$true] %s269
          %275 = dma.hbm_to_vmem [thread:$0]  %s268, 256, %s270, %s257, 256, 128, 8
        $region32: #{tpu_custom_call.1} parent=23 // pred_fallthru
          _
        // Predicated region
        $region33: #{tpu_custom_call.1} parent=23 // pred_check
          %p276 = pneg %p118
        $region34: #{tpu_custom_call.1} parent=23 // pred_check_branch
          %278 = sbr.rel (%p276) target = $region36
        $region35: #{tpu_custom_call.1} parent=23 // pred_region
          %s279 = sand.u32 %s21, 1
          %s280 = scalar_lea.sflag [#allocation9], %s279
          %s281 = sand.u32 %s108, 1
          %s282 = smul.addr %s281, 16
          %s283 = scalar_lea.vmem [#allocation10], %s282
          %285 = vsyncadd %s280, 0
          %s286 = smul.addr %s28, 4
          %s287 = sadd.s32 %s30, %s286
          %s288 = smul.addr %s287, 8
          %s289 = scalar_lea.hbm %s2, %s288
          %s290 = sshll.u32 %s289, 4
          %s291 = int_to_ptr.hbm [resolvable:$true] %s290
          %s292 = sshll.u32 %s283, 4
          %s293 = int_to_ptr.vmem [resolvable:$true] %s292
          %298 = dma.hbm_to_vmem [thread:$0]  %s291, 256, %s293, %s280, 256, 128, 8
        $region36: #{tpu_custom_call.1} parent=23 // pred_fallthru
          _
      $region24: #{tpu_custom_call.1} parent=5 // pred_fallthru
        _
      %p299 = scmp.le.s32.totalorder 1, %s21
      %p300 = scmp.lt.s32.totalorder %s21, 9
      %p301 = pnand %p299, %p300
      %p302 = pneg %p301
      // Predicated region
      $region37: #{tpu_custom_call.1} parent=5 // pred_check
        _
      $region38: #{tpu_custom_call.1} parent=5 // pred_check_branch
        %304 = sbr.rel (%p301) target = $region40
      $region39: #{tpu_custom_call.1} parent=5 // pred_region
        %s305 = ssub.s32 %s21, 1
        %s306 = sand.u32 %s55, 1
        %s307 = scalar_lea.sflag [#allocation6], %s306
        %s308 = sand.u32 %s55, 1
        %s309 = smul.addr %s308, 16
        %s310 = scalar_lea.vmem [#allocation5], %s309
        // Predicated region
        $region41: #{tpu_custom_call.1} parent=39 // pred_check
          %p311 = pneg %p68
        $region42: #{tpu_custom_call.1} parent=39 // pred_check_branch
          %313 = sbr.rel (%p311) target = $region44
        $region43: #{tpu_custom_call.1} parent=39 // pred_region
          %315 = dma.done %s307, 256
        $region44: #{tpu_custom_call.1} parent=39 // pred_fallthru
          _
        %s316 = sand.u32 %s26, 1
        %s317 = scalar_lea.sflag [#allocation9], %s316
        %s318 = sand.u32 %s83, 1
        %s319 = smul.addr %s318, 16
        %s320 = scalar_lea.vmem [#allocation8], %s319
        // Predicated region
        $region45: #{tpu_custom_call.1} parent=39 // pred_check
          %p321 = pneg %p96
        $region46: #{tpu_custom_call.1} parent=39 // pred_check_branch
          %323 = sbr.rel (%p321) target = $region48
        $region47: #{tpu_custom_call.1} parent=39 // pred_region
          %325 = dma.done %s317, 256
        $region48: #{tpu_custom_call.1} parent=39 // pred_fallthru
          _
        %s326 = sand.u32 %s26, 1
        %s327 = scalar_lea.sflag [#allocation9], %s326
        %s328 = sand.u32 %s111, 1
        %s329 = smul.addr %s328, 16
        %s330 = scalar_lea.vmem [#allocation10], %s329
        // Predicated region
        $region49: #{tpu_custom_call.1} parent=39 // pred_check
          %p331 = pneg %p124
        $region50: #{tpu_custom_call.1} parent=39 // pred_check_branch
          %333 = sbr.rel (%p331) target = $region52
        $region51: #{tpu_custom_call.1} parent=39 // pred_region
          %335 = dma.done %s327, 256
        $region52: #{tpu_custom_call.1} parent=39 // pred_fallthru
          _
        // Predicated region
        $region53: #{tpu_custom_call.1} parent=39 // pred_check
          %p336 = pneg %p145
        $region54: #{tpu_custom_call.1} parent=39 // pred_check_branch
          %338 = sbr.rel (%p336) target = $region56
        $region55: #{tpu_custom_call.1} parent=39 // pred_region
          %340 = dma.done [#allocation12], 512
        $region56: #{tpu_custom_call.1} parent=39 // pred_fallthru
          _
        %s341 = sand.u32 %s55, 1
        %s342 = scalar_lea.sflag [#allocation6], %s341
        %s343 = sand.u32 %s55, 1
        %s344 = smul.addr %s343, 16
        %s345 = scalar_lea.vmem [#allocation5], %s344
        %p346 = pneg %p68
        %p347 = pneg %p65
        %s348 = sand.u32 %s26, 1
        %s349 = scalar_lea.sflag [#allocation9], %s348
        %s350 = sand.u32 %s83, 1
        %s351 = smul.addr %s350, 16
        %s352 = scalar_lea.vmem [#allocation8], %s351
        %p353 = pneg %p96
        %p354 = pneg %p93
        %s355 = sand.u32 %s26, 1
        %s356 = scalar_lea.sflag [#allocation9], %s355
        %s357 = sand.u32 %s111, 1
        %s358 = smul.addr %s357, 16
        %s359 = scalar_lea.vmem [#allocation10], %s358
        %p360 = pneg %p124
        %p361 = pneg %p121
        %p362 = pneg %p145
        %p363 = pneg %p142
        %p364 = pneg %p166
        %p365 = pneg %p163
        %p366 = pneg %p194
        %p367 = pneg %p191
        %s368 = sand.u32 %s181, 1
        %s369 = scalar_lea.sflag [#allocation7], %s368
        %s370 = sand.u32 %s181, 1
        %s371 = smul.addr %s370, 8
        %s372 = scalar_lea.vmem [#allocation13], %s371
        %p373 = scmp.eq.s32.totalorder %s33, 0
        // Predicated region
        $region57: #{tpu_custom_call.1} parent=39 // pred_check
          %p374 = pneg %p373
        $region58: #{tpu_custom_call.1} parent=39 // pred_check_branch
          %376 = sbr.rel (%p374) target = $region60
        $region59: #{tpu_custom_call.1} parent=39 // pred_region
          %vm377 = vcmask 7168
          %378 = vst.msk [vmem:[#allocation3] sm:$0xff] %vm377, -inf
          %379 = vst.msk [vmem:[#allocation3 + $0x8] sm:$0xff] %vm377, -inf
          %380 = vst.msk [vmem:[#allocation4] sm:$0xff] %vm377, 0.0
          %381 = vst.msk [vmem:[#allocation4 + $0x8] sm:$0xff] %vm377, 0.0
          %vm382 = vcmask 130048
          %383 = vst.msk [vmem:[#allocation2] sm:$0xff] %vm382, 0.0
          %384 = vst.msk [vmem:[#allocation2 + $0x8] sm:$0xff] %vm382, 0.0
        $region60: #{tpu_custom_call.1} parent=39 // pred_fallthru
          _
        %v385 = vld [vmem:[%s310] sm:$0xff]
        %v386 = vld [vmem:[%s310 + $0x8] sm:$0xff]
        %v387 = vld [vmem:[%s320] sm:$0xff]
        %v388 = vld [vmem:[%s320 + $0x8] sm:$0xff]
        %v389 = vld [vmem:[%s330] sm:$0xff]
        %v390 = vld [vmem:[%s330 + $0x8] sm:$0xff]
        %vm391 = vcmask 130048
        %v393 = vsel %vm391, %v385, 0
        %v396 = vsel %vm391, %v387, 0
        %398 = vmatpush.xpose.msra.mxu0 0.0
        %399 = vmatpush.xpose.msra.mxu0 0.0
        %400 = vmatpush.xpose.msra.mxu0 0.0
        %401 = vmatpush.xpose.msra.mxu0 0.0
        %402 = vmatpush.xpose.msra.mxu0 0.0
        %403 = vmatpush.xpose.msra.mxu0 0.0
        %404 = vmatpush.xpose.msra.mxu0 0.0
        %405 = vmatpush.xpose.msra.mxu0 0.0
        %406 = vmatpush.xpose.msra.mxu0 0.0
        %407 = vmatpush.xpose.msra.mxu0 0.0
        %408 = vmatpush.xpose.msra.mxu0 0.0
        %409 = vmatpush.xpose.msra.mxu0 0.0
        %410 = vmatpush.xpose.msra.mxu0 0.0
        %411 = vmatpush.xpose.msra.mxu0 0.0
        %412 = vmatpush.xpose.msra.mxu0 0.0
        %413 = vmatpush.xpose.msra.mxu0 %v396
        %414 = vmatmul.f32.gmra.mxu0 %v393
        %v415 = vpop.f32.mrf.mxu0
        %v416 = vadd.f32 0.0, %v415
        %417 = vdwg.mxu0
        %v419 = vsel %vm391, %v386, 0
        %v422 = vsel %vm391, %v388, 0
        %424 = vmatpush.xpose.msra.mxu0 0.0
        %425 = vmatpush.xpose.msra.mxu0 0.0
        %426 = vmatpush.xpose.msra.mxu0 0.0
        %427 = vmatpush.xpose.msra.mxu0 0.0
        %428 = vmatpush.xpose.msra.mxu0 0.0
        %429 = vmatpush.xpose.msra.mxu0 0.0
        %430 = vmatpush.xpose.msra.mxu0 0.0
        %431 = vmatpush.xpose.msra.mxu0 0.0
        %432 = vmatpush.xpose.msra.mxu0 0.0
        %433 = vmatpush.xpose.msra.mxu0 0.0
        %434 = vmatpush.xpose.msra.mxu0 0.0
        %435 = vmatpush.xpose.msra.mxu0 0.0
        %436 = vmatpush.xpose.msra.mxu0 0.0
        %437 = vmatpush.xpose.msra.mxu0 0.0
        %438 = vmatpush.xpose.msra.mxu0 0.0
        %439 = vmatpush.xpose.msra.mxu0 %v422
        %440 = vmatmul.f32.gmra.mxu0 %v419
        %v441 = vpop.f32.mrf.mxu0
        %v442 = vadd.f32 0.0, %v441
        %443 = vdwg.mxu0
        %v444 = vld [vmem:[#allocation3] sm:$0xff]
        %v445 = vld [vmem:[#allocation3 + $0x8] sm:$0xff]
        %vm446 = vcmask 64512
        %v447 = vsel %vm446, %v416, -inf
        %448 = vmax.xlane.f32.xlu0 %v447
        %v449 = vpop.xlane.xlu0 %448
        %v450 = vsel %vm446, %v442, -inf
        %451 = vmax.xlane.f32.xlu0 %v450
        %v452 = vpop.xlane.xlu0 %451
        %v453 = vmax.f32 %v444, %v449
        %v454 = vmax.f32 %v445, %v452
        %v455 = vsub.f32 %v444, %v453
        %v456 = vsub.f32 %v445, %v454
        %v457 = vpow.pop %v455
        %v458 = vpow.pop %v456
        %460 = vset.pattern.permute.xlu0 0
        %461 = vperm.xlu0 %460, %v453
        %v462 = vpop.permute.xlu0 %461
        %465 = vset.pattern.permute.xlu0 0
        %466 = vperm.xlu0 %465, %v454
        %v467 = vpop.permute.xlu0 %466
        %v469 = vsub.f32 %v416, %v462
        %v470 = vsub.f32 %v442, %v467
        %v471 = vpow.pop %v469
        %v472 = vpow.pop %v470
        %v473 = vld [vmem:[#allocation4] sm:$0xff]
        %v474 = vld [vmem:[#allocation4 + $0x8] sm:$0xff]
        %v475 = vmul.f32 %v457, %v473
        %v476 = vmul.f32 %v458, %v474
        %v477 = vsel %vm446, %v471, 0.0
        %478 = vadd.xlane.f32.xlu0 %v477
        %v479 = vpop.xlane.xlu0 %478
        %v480 = vsel %vm446, %v472, 0.0
        %481 = vadd.xlane.f32.xlu0 %v480
        %v482 = vpop.xlane.xlu0 %481
        %v483 = vadd.f32 %v475, %v479
        %v484 = vadd.f32 %v476, %v482
        %vm485 = vcmask 7168
        %486 = vst.msk [vmem:[#allocation4] sm:$0xff] %vm485, %v483
        %487 = vst.msk [vmem:[#allocation4 + $0x8] sm:$0xff] %vm485, %v484
        %v489 = vsel %vm446, %v471, 0
        %491 = vmatpush.msra.mxu0 0.0
        %492 = vmatpush.msra.mxu0 0.0
        %493 = vmatpush.msra.mxu0 0.0
        %494 = vmatpush.msra.mxu0 0.0
        %495 = vmatpush.msra.mxu0 0.0
        %496 = vmatpush.msra.mxu0 0.0
        %497 = vmatpush.msra.mxu0 0.0
        %498 = vmatpush.msra.mxu0 0.0
        %499 = vmatpush.msra.mxu0 0.0
        %500 = vmatpush.msra.mxu0 0.0
        %501 = vmatpush.msra.mxu0 0.0
        %502 = vmatpush.msra.mxu0 0.0
        %503 = vmatpush.msra.mxu0 0.0
        %504 = vmatpush.msra.mxu0 0.0
        %505 = vmatpush.msra.mxu0 0.0
        %506 = vmatpush.msra.mxu0 %v389
        %507 = vmatmul.f32.gmra.mxu0 %v489
        %v508 = vpop.f32.mrf.mxu0
        %v509 = vadd.f32 0.0, %v508
        %510 = vdwg.mxu0
        %v512 = vsel %vm446, %v472, 0
        %514 = vmatpush.msra.mxu0 0.0
        %515 = vmatpush.msra.mxu0 0.0
        %516 = vmatpush.msra.mxu0 0.0
        %517 = vmatpush.msra.mxu0 0.0
        %518 = vmatpush.msra.mxu0 0.0
        %519 = vmatpush.msra.mxu0 0.0
        %520 = vmatpush.msra.mxu0 0.0
        %521 = vmatpush.msra.mxu0 0.0
        %522 = vmatpush.msra.mxu0 0.0
        %523 = vmatpush.msra.mxu0 0.0
        %524 = vmatpush.msra.mxu0 0.0
        %525 = vmatpush.msra.mxu0 0.0
        %526 = vmatpush.msra.mxu0 0.0
        %527 = vmatpush.msra.mxu0 0.0
        %528 = vmatpush.msra.mxu0 0.0
        %529 = vmatpush.msra.mxu0 %v390
        %530 = vmatmul.f32.gmra.mxu0 %v512
        %v531 = vpop.f32.mrf.mxu0
        %v532 = vadd.f32 0.0, %v531
        %533 = vdwg.mxu0
        %v534 = vld [vmem:[#allocation2] sm:$0xff]
        %v535 = vld [vmem:[#allocation2 + $0x8] sm:$0xff]
        %537 = vset.pattern.permute.xlu0 0
        %538 = vperm.xlu0 %537, %v457
        %v539 = vpop.permute.xlu0 %538
        %542 = vset.pattern.permute.xlu0 0
        %543 = vperm.xlu0 %542, %v458
        %v544 = vpop.permute.xlu0 %543
        %v546 = vmul.f32 %v539, %v534
        %v547 = vmul.f32 %v544, %v535
        %v548 = vadd.f32 %v546, %v509
        %v549 = vadd.f32 %v547, %v532
        %550 = vst.msk [vmem:[#allocation2] sm:$0xff] %vm391, %v548
        %551 = vst.msk [vmem:[#allocation2 + $0x8] sm:$0xff] %vm391, %v549
        %552 = vst.msk [vmem:[#allocation3] sm:$0xff] %vm485, %v453
        %553 = vst.msk [vmem:[#allocation3 + $0x8] sm:$0xff] %vm485, %v454
        %p554 = scmp.eq.s32.totalorder %s33, 1
        // Predicated region
        $region61: #{tpu_custom_call.1} parent=39 // pred_check
          %p555 = pneg %p554
        $region62: #{tpu_custom_call.1} parent=39 // pred_check_branch
          %557 = sbr.rel (%p555) target = $region64
        $region63: #{tpu_custom_call.1} parent=39 // pred_region
          %v558 = vld [vmem:[#allocation4] sm:$0xff]
          %v559 = vld [vmem:[#allocation4 + $0x8] sm:$0xff]
          %v560 = vrcp.pop %v558
          %v561 = vrcp.pop %v559
          %v562 = vld [vmem:[#allocation2] sm:$0xff]
          %v563 = vld [vmem:[#allocation2 + $0x8] sm:$0xff]
          %565 = vset.pattern.permute.xlu0 0
          %566 = vperm.xlu0 %565, %v560
          %v567 = vpop.permute.xlu0 %566
          %570 = vset.pattern.permute.xlu0 0
          %571 = vperm.xlu0 %570, %v561
          %v572 = vpop.permute.xlu0 %571
          %v574 = vmul.f32 %v562, %v567
          %v575 = vmul.f32 %v563, %v572
          %577 = vrot.lane.b32.xlu0 %v575, 16
          %v578 = vpop.permute.xlu0 %577
          %v580 = vsel %vm391, %v574, %v578
          %v581 = vld [vmem:[#allocation11] sm:$0xff]
          %v582 = vld [vmem:[#allocation11 + $0x8] sm:$0xff]
          %v583 = vld [vmem:[#allocation11 + $0x10] sm:$0xff]
          %v584 = vld [vmem:[#allocation11 + $0x18] sm:$0xff]
          %v585 = vld [vmem:[%s4] sm:$0x1]
          %v587 = vperm.slane %v585, 0
          %vm589 = vcmask 261120
          %v591 = vsel %vm589, %v580, 0
          %593 = vmatpush.msra.mxu0 0.0
          %594 = vmatpush.msra.mxu0 0.0
          %595 = vmatpush.msra.mxu0 0.0
          %596 = vmatpush.msra.mxu0 0.0
          %597 = vmatpush.msra.mxu0 0.0
          %598 = vmatpush.msra.mxu0 0.0
          %599 = vmatpush.msra.mxu0 0.0
          %600 = vmatpush.msra.mxu0 0.0
          %601 = vmatpush.msra.mxu0 0.0
          %602 = vmatpush.msra.mxu0 0.0
          %603 = vmatpush.msra.mxu0 0.0
          %604 = vmatpush.msra.mxu0 0.0
          %605 = vmatpush.msra.mxu0 %v584
          %606 = vmatpush.msra.mxu0 %v583
          %607 = vmatpush.msra.mxu0 %v582
          %608 = vmatpush.msra.mxu0 %v581
          %609 = vmatmul.f32.gmra.mxu0 %v591
          %v610 = vpop.f32.mrf.mxu0
          %v611 = vadd.f32 %v587, %v610
          %612 = vdwg.mxu0
          %613 = vst.msk [vmem:[%s372] sm:$0xff] %vm589, %v611
        $region64: #{tpu_custom_call.1} parent=39 // pred_fallthru
          _
        %s614 = sand.u32 %s181, 1
        %s615 = scalar_lea.sflag [#allocation7], %s614
        %s616 = sand.u32 %s181, 1
        %s617 = smul.addr %s616, 8
        %s618 = scalar_lea.vmem [#allocation13], %s617
        // Predicated region
        $region65: #{tpu_custom_call.1} parent=39 // pred_check
          %p619 = pneg %p191
        $region66: #{tpu_custom_call.1} parent=39 // pred_check_branch
          %621 = sbr.rel (%p619) target = $region68
        $region67: #{tpu_custom_call.1} parent=39 // pred_region
          %623 = vsyncadd %s615, 0
          %s624 = smul.addr %s31, 2
          %s625 = sadd.s32 %s32, %s624
          %s626 = smul.addr %s625, 8
          %s627 = scalar_lea.hbm %s5, %s626
          %s629 = sshll.u32 %s618, 4
          %s630 = int_to_ptr.vmem [resolvable:$true] %s629
          %s631 = sshll.u32 %s627, 4
          %s632 = int_to_ptr.hbm [resolvable:$true] %s631
          %634 = dma.vmem_to_hbm [thread:$0]  %s630, 128, %s632, %s615
        $region68: #{tpu_custom_call.1} parent=39 // pred_fallthru
          _
      $region40: #{tpu_custom_call.1} parent=5 // pred_fallthru
        _
      %p635 = scmp.le.s32.totalorder 2, %s21
      // Predicated region
      $region69: #{tpu_custom_call.1} parent=5 // pred_check
        %p636 = pneg %p635
      $region70: #{tpu_custom_call.1} parent=5 // pred_check_branch
        %638 = sbr.rel (%p636) target = $region72
      $region71: #{tpu_custom_call.1} parent=5 // pred_region
        %s639 = ssub.s32 %s21, 2
        // Predicated region
        $region73: #{tpu_custom_call.1} parent=71 // pred_check
          %p640 = pneg %p197
        $region74: #{tpu_custom_call.1} parent=71 // pred_check_branch
          %642 = sbr.rel (%p640) target = $region76
        $region75: #{tpu_custom_call.1} parent=71 // pred_region
          %s643 = sand.u32 %s182, 1
          %s644 = scalar_lea.sflag [#allocation7], %s643
          %s645 = sand.u32 %s182, 1
          %s646 = smul.addr %s645, 8
          %s647 = scalar_lea.vmem [#allocation13], %s646
          %649 = dma.done %s644, 128
        $region76: #{tpu_custom_call.1} parent=71 // pred_fallthru
          _
      $region72: #{tpu_custom_call.1} parent=5 // pred_fallthru
        _
    $region6: #{tpu_custom_call.1} parent=1 // loop_footer
      %s25 = sadd.s32 1, %s21
    $region7: #{tpu_custom_call.1} parent=1 // loop_footer_branch
      %20 = sbr.rel target = $region3
    $region8: #{tpu_custom_call.1} parent=1 // loop_exit
      _
    %650 = vsyncpa [#allocation6], 1
    %s651 = scalar_lea.sflag [#allocation6], 1
    %652 = vsyncpa %s651, 1
    %653 = vsyncpa [#allocation9], 1
    %s654 = scalar_lea.sflag [#allocation9], 1
    %655 = vsyncpa %s654, 1
    %656 = vsyncpa [#allocation12], 1
    %657 = vsyncpa [#allocation7], 1
    %s658 = scalar_lea.sflag [#allocation7], 1
    %659 = vsyncpa %s658, 1

</llo_original>
